<compile_context>
chip_gen: v7x
topology: tpu7x:2x2x1
jax: 0.10.0
libtpu: 0.0.40
codegen_flags: <defaults>
</compile_context>

<pallas_src>
import jax
import jax.numpy as jnp
from jax.experimental import pallas as pl
from jax.experimental.pallas import tpu as pltpu

LANES = 128
SUBLANES = 8


def _default_num_core_splits():
    # v7x has 2 TensorCores per chip; v5e/v6e have 1 (a megacore split there is
    # pure overhead).  Fall back to 1 if we cannot tell (e.g. interpret mode).
    try:
        kind = jax.devices()[0].device_kind.lower()
    except Exception:
        return 1
    return 2 if "v7" in kind else 1


def charbonnier_loss(x, y, eps=1e-12, block_rows=None, num_core_splits=None):
    """Exact equivalent of CharbonnierLoss.forward(X, Y) -> scalar float32."""
    assert x.shape == y.shape, (x.shape, y.shape)
    n = x.size
    assert n > 0
    eps_f = float(eps)  # Python scalar -> trace-time literal, not a captured array.

    xf = x.reshape(-1)
    yf = y.reshape(-1)
    itemsize = jnp.dtype(x.dtype).itemsize

    # Lane-ragged tail (< 128 elements) is reduced in plain JAX; the kernel
    # streams only the 128-aligned prefix, so no full jnp.pad HBM copy.
    n_prefix = (n // LANES) * LANES
    tail = n - n_prefix
    if tail:
        xt = xf[n_prefix:].astype(jnp.float32)
        yt = yf[n_prefix:].astype(jnp.float32)
        dt = xt - yt
        tail_sum = jnp.sum(jnp.sqrt(dt * dt + eps_f))
    else:
        tail_sum = jnp.float32(0.0)

    if n_prefix == 0:
        return (tail_sum / n).astype(jnp.float32)

    # TODO(synk): for ragged numel the prefix slice may still materialize a copy
    # in XLA; it never triggers for typical NCHW image tensors (numel % 128 == 0).
    R = n_prefix // LANES
    x2 = xf[:n_prefix].reshape(R, LANES)
    y2 = yf[:n_prefix].reshape(R, LANES)

    # Streaming tile: large enough that the ~0.35us/step fixed overhead is
    # hidden under HBM DMA time.  2048x128 f32 = 1 MiB per buffer (4 MiB total
    # double-buffered for 2 inputs); doubled rows for 2-byte dtypes.  Tunable.
    if block_rows is None:
        block_rows = 4096 if itemsize <= 2 else 2048
    r_pad8 = ((R + SUBLANES - 1) // SUBLANES) * SUBLANES
    block_rows = int(min(block_rows, r_pad8))
    block_rows = max(SUBLANES, (block_rows // SUBLANES) * SUBLANES)

    if num_core_splits is None:
        num_core_splits = _default_num_core_splits()

    num_blocks = (R + block_rows - 1) // block_rows      # row-blocks total
    NC = max(1, min(int(num_core_splits), num_blocks))   # megacore split
    K = (num_blocks + NC - 1) // NC                      # row-blocks per core
    needs_row_mask = (num_blocks * block_rows != R)      # boundary block ragged
    has_dup_steps = (NC * K != num_blocks)               # tail steps to skip

    def kernel(x_ref, y_ref, o_ref):
        c = pl.program_id(0)
        k = pl.program_id(1)
        blk = c * K + k

        @pl.when(k == 0)
        def _init():
            o_ref[...] = jnp.zeros_like(o_ref)

        def _accumulate(err):
            # vreg-shaped per-lane partial sums; the reshape groups whole
            # (8,128) tiles so it stays vreg-resident.  No cross-lane reduce in
            # the hot loop; one full reduce of the tiny partials happens in JAX.
            o_ref[...] += err.reshape(
                block_rows // SUBLANES, SUBLANES, LANES).sum(axis=0)

        def _body():
            xb = x_ref[...].astype(jnp.float32)
            yb = y_ref[...].astype(jnp.float32)
            d = xb - yb
            err = jnp.sqrt(d * d + eps_f)
            if needs_row_mask:
                is_boundary = blk == num_blocks - 1

                @pl.when(jnp.logical_not(is_boundary))
                def _interior():          # fast path: no mask cost on interior tiles
                    _accumulate(err)

                @pl.when(is_boundary)
                def _ragged_tail():
                    rows = blk * block_rows + jax.lax.broadcasted_iota(
                        jnp.int32, (block_rows, LANES), 0)
                    # Select (not multiply) so overhang garbage / NaNs are zeroed.
                    _accumulate(jnp.where(rows < R, err, 0.0))
            else:
                _accumulate(err)

        if has_dup_steps:
            pl.when(blk < num_blocks)(_body)
        else:
            _body()

    if has_dup_steps:
        def row_block_index(c, k):
            # Clamp so duplicate tail steps stay in bounds; compute skipped in-kernel.
            return (jnp.minimum(c * K + k, num_blocks - 1), 0)
    else:
        def row_block_index(c, k):
            return (c * K + k, 0)

    # 2 inputs x 2 buffers x tile, plus headroom; only override when it would
    # exceed v5e's 16 MiB scoped default.
    vmem_needed = 4 * block_rows * LANES * itemsize + (2 << 20)
    compiler_params = pltpu.CompilerParams(
        # TODO(synk): on v7x verify the leading "parallel" axis shards across
        # both TensorCores; if not, switch to CORE_PARALLEL / pl.core_map.
        dimension_semantics=("parallel", "arbitrary"),
        vmem_limit_bytes=vmem_needed if vmem_needed > (16 << 20) else None,
    )

    cost = pl.CostEstimate(
        flops=5 * n_prefix,
        transcendentals=n_prefix,
        bytes_accessed=2 * n_prefix * itemsize + NC * SUBLANES * LANES * 4,
    )

    partials = pl.pallas_call(
        kernel,
        out_shape=jax.ShapeDtypeStruct((NC * SUBLANES, LANES), jnp.float32),
        grid_spec=pltpu.PrefetchScalarGridSpec(
            num_scalar_prefetch=0,
            grid=(NC, K),
            in_specs=[
                # TODO(synk): sweep pipeline_mode=pl.Buffered(3) on v7x.
                pl.BlockSpec((block_rows, LANES), row_block_index),
                pl.BlockSpec((block_rows, LANES), row_block_index),
            ],
            out_specs=pl.BlockSpec((SUBLANES, LANES), lambda c, k: (c, 0)),
        ),
        compiler_params=compiler_params,
        cost_estimate=cost,
    )(x2, y2)

    total = jnp.sum(partials) + tail_sum
    return (total / n).astype(jnp.float32)


if __name__ == "__main__":
    key = jax.random.PRNGKey(0)
    kx, ky = jax.random.split(key)

    # NCHW inputs, as the PyTorch module expects.
    x = jax.random.normal(kx, (2, 4, 16, 16), dtype=jnp.float32)
    y = jax.random.normal(ky, (2, 4, 16, 16), dtype=jnp.float32)

    loss = charbonnier_loss(x, y, eps=1e-12)
    jax.block_until_ready(loss)

    diff = x - y
    ref = jnp.mean(jnp.sqrt(diff * diff + 1e-12))
    assert jnp.allclose(loss, ref, rtol=1e-5, atol=1e-6), (loss, ref)

    # Ragged shape: exercises the JAX lane-tail path and the boundary-row mask.
    x2 = jax.random.normal(kx, (2, 3, 9, 21), dtype=jnp.float32)
    y2 = jax.random.normal(ky, (2, 3, 9, 21), dtype=jnp.float32)
    loss2 = charbonnier_loss(x2, y2, eps=1e-12)
    jax.block_until_ready(loss2)

    d2 = x2 - y2
    ref2 = jnp.mean(jnp.sqrt(d2 * d2 + 1e-12))
    assert jnp.allclose(loss2, ref2, rtol=1e-5, atol=1e-6), (loss2, ref2)

    print("KERNEL_OK")
</pallas_src>

<mosaic_0001>
module attributes {stable_mosaic.version = 11 : i64} {
  func.func @kernel(%arg0: i32, %arg1: i32, %arg2: memref<16x128xf32, #tpu.memory_space<vmem>>, %arg3: memref<16x128xf32, #tpu.memory_space<vmem>>, %arg4: memref<8x128xf32, #tpu.memory_space<vmem>>) attributes {dimension_semantics = [#tpu.dimension_semantics<parallel>, #tpu.dimension_semantics<arbitrary>], iteration_bounds = array<i64: 1, 1>, scalar_prefetch = 0 : i64, scratch_operands = 0 : i64, tpu.core_type = #tpu.core_type<tc>, window_params = [{transform_indices = @transform_0, window_bounds = array<i64: 16, 128>}, {transform_indices = @transform_1, window_bounds = array<i64: 16, 128>}, {transform_indices = @transform_2, window_bounds = array<i64: 8, 128>}]} {
    %c0_i32 = arith.constant 0 : i32
    %0 = arith.cmpi eq, %arg1, %c0_i32 : i32
    %1 = arith.extui %0 : i1 to i32
    %c0_i32_0 = arith.constant 0 : i32
    %2 = arith.cmpi ne, %1, %c0_i32_0 : i32
    scf.if %2 {
      %cst_9 = arith.constant 0.000000e+00 : f32
      %15 = vector.broadcast %cst_9 : f32 to vector<8x128xf32>
      %c0_10 = arith.constant 0 : index
      %c0_11 = arith.constant 0 : index
      %16 = vector.load %arg4[%c0_10, %c0_11] : memref<8x128xf32, #tpu.memory_space<vmem>>, vector<8x128xf32>
      tpu.vector_store %arg4[%c0_10, %c0_11], %15 {strides = array<i32>} : memref<8x128xf32, #tpu.memory_space<vmem>>, vector<8x128xf32>,
    } else {
    }
    %c0 = arith.constant 0 : index
    %c0_1 = arith.constant 0 : index
    %3 = vector.load %arg2[%c0, %c0_1] : memref<16x128xf32, #tpu.memory_space<vmem>>, vector<16x128xf32>
    %c0_2 = arith.constant 0 : index
    %c0_3 = arith.constant 0 : index
    %4 = vector.load %arg3[%c0_2, %c0_3] : memref<16x128xf32, #tpu.memory_space<vmem>>, vector<16x128xf32>
    %5 = arith.subf %3, %4 : vector<16x128xf32>
    %6 = arith.mulf %5, %5 : vector<16x128xf32>
    %cst = arith.constant 9.99999996E-13 : f32
    %7 = vector.broadcast %cst : f32 to vector<16x128xf32>
    %8 = arith.addf %6, %7 : vector<16x128xf32>
    %9 = math.sqrt %8 : vector<16x128xf32>
    %c0_4 = arith.constant 0 : index
    %c0_5 = arith.constant 0 : index
    %10 = vector.load %arg4[%c0_4, %c0_5] : memref<8x128xf32, #tpu.memory_space<vmem>>, vector<8x128xf32>
    %11 = vector.shape_cast %9 : vector<16x128xf32> to vector<2x8x128xf32>
    %cst_6 = arith.constant dense<0.000000e+00> : vector<8x128xf32>
    %12 = vector.multi_reduction <add>, %11, %cst_6 [0] : vector<2x8x128xf32> to vector<8x128xf32>
    %13 = arith.addf %10, %12 : vector<8x128xf32>
    %c0_7 = arith.constant 0 : index
    %c0_8 = arith.constant 0 : index
    %14 = vector.load %arg4[%c0_7, %c0_8] : memref<8x128xf32, #tpu.memory_space<vmem>>, vector<8x128xf32>
    tpu.vector_store %arg4[%c0_7, %c0_8], %13 {strides = array<i32>} : memref<8x128xf32, #tpu.memory_space<vmem>>, vector<8x128xf32>,
    return
  }
  func.func @transform_0(%arg0: i32, %arg1: i32) -> (i32, i32) {
    %c1_i32 = arith.constant 1 : i32
    %0 = arith.muli %arg0, %c1_i32 : i32
    %1 = arith.addi %0, %arg1 : i32
    %c0_i32 = arith.constant 0 : i32
    %c0_i32_0 = arith.constant 0 : i32
    return %1, %c0_i32 : i32, i32
  }
  func.func @transform_1(%arg0: i32, %arg1: i32) -> (i32, i32) {
    %c1_i32 = arith.constant 1 : i32
    %0 = arith.muli %arg0, %c1_i32 : i32
    %1 = arith.addi %0, %arg1 : i32
    %c0_i32 = arith.constant 0 : i32
    %c0_i32_0 = arith.constant 0 : i32
    return %1, %c0_i32 : i32, i32
  }
  func.func @transform_2(%arg0: i32, %arg1: i32) -> (i32, i32) {
    %c0_i32 = arith.constant 0 : i32
    %c0_i32_0 = arith.constant 0 : i32
    return %arg0, %c0_i32 : i32, i32
  }
}

</mosaic_0001>

<llo_original>
// kernel: tpu_custom_call.1
$region0: #{tpu_custom_call.1}
  #allocation0 [shape = 'u32[]', space=smem, size = 0x4, offset = 0x4, fixed_abs, tag = 'smem constant byte address 0x4 - core index']
  #allocation1 [shape = 'u32[144,128]{1,0:T(1,128)}', space=vmem, size = 0x12000, scoped, tag = 'internal scratch']
  %s0 = inlined_call_operand.hbm [shape: f32[16,128], index: 0, kind: input, shape index: {}]
  %s1 = inlined_call_operand.hbm [shape: f32[16,128], index: 1, kind: input, shape index: {}]
  %s2 = inlined_call_operand.hbm [shape: f32[8,128], index: 2, kind: output, shape index: {}]
  %s3 = sld [smem:[#allocation0]]
  $region30: #{tpu_custom_call.1} parent=0
    _
  %s5 = ssub.s32 1, %s3
  %s6 = scalar_select 0, %s5, %s3
  $region1: #{tpu_custom_call.1} parent=0
    #allocation2 [shape = 'u8[8192]{0}', space=vmem, size = 0x2000, scoped, tag = 'input window, operand 0, single buffered']
    #allocation3 [shape = 's32[1]{0}', space=sflag, size = 0x4, scoped, tag = 'scoped memory for tpu_custom_call.1']
    #allocation4 [shape = 's32[1]{0}', space=sflag, size = 0x4, scoped, tag = 'scoped memory for tpu_custom_call.1']
    #allocation5 [shape = 'u8[8192]{0}', space=vmem, size = 0x2000, scoped, tag = 'input window, operand 1, single buffered']
    #allocation6 [shape = 's32[1]{0}', space=sflag, size = 0x4, scoped, tag = 'scoped memory for tpu_custom_call.1']
    #allocation7 [shape = 'u8[4096]{0}', space=vmem, size = 0x1000, scoped, tag = 'output window, operand 0, single buffered']
    %7 = vsyncpa [#allocation3], 0
    %8 = vsyncpa [#allocation6], 0
    %9 = vsyncpa [#allocation4], 0
    // Predicated region
    $region2: #{tpu_custom_call.1} parent=1 // pred_check
      _
    $region3: #{tpu_custom_call.1} parent=1 // pred_check_branch
      %11 = sbr.rel (0) target = $region5
    $region4: #{tpu_custom_call.1} parent=1 // pred_region
      %s12 = sadd.s32 0, 0
      %s13 = smul.u32 2, %s12
      %s15 = ssub.s32 256, 256
      %16 = vsyncadd [#allocation3], %s15
      %s17 = smul.addr %s13, 128
      %s18 = scalar_lea.hbm %s0, %s17
      %s19 = sshll.u32 [#allocation2], 4
      %s20 = int_to_ptr.vmem [resolvable:$true] %s19
      %25 = dma.hbm_to_vmem [thread:$0]  %s18, 256, %s20, [#allocation3], 128, 128, 8
    $region5: #{tpu_custom_call.1} parent=1 // pred_fallthru
      _
    // Predicated region
    $region6: #{tpu_custom_call.1} parent=1 // pred_check
      _
    $region7: #{tpu_custom_call.1} parent=1 // pred_check_branch
      %27 = sbr.rel (0) target = $region9
    $region8: #{tpu_custom_call.1} parent=1 // pred_region
      %s28 = sadd.s32 0, 0
      %s29 = smul.u32 2, %s28
      %s31 = ssub.s32 256, 256
      %32 = vsyncadd [#allocation6], %s31
      %s33 = smul.addr %s29, 128
      %s34 = scalar_lea.hbm %s1, %s33
      %s35 = sshll.u32 [#allocation5], 4
      %s36 = int_to_ptr.vmem [resolvable:$true] %s35
      %41 = dma.hbm_to_vmem [thread:$0]  %s34, 256, %s36, [#allocation6], 128, 128, 8
    $region9: #{tpu_custom_call.1} parent=1 // pred_fallthru
      _
    // Predicated region
    $region10: #{tpu_custom_call.1} parent=1 // pred_check
      _
    $region11: #{tpu_custom_call.1} parent=1 // pred_check_branch
      %43 = sbr.rel (0) target = $region13
    $region12: #{tpu_custom_call.1} parent=1 // pred_region
      %44 = dma.done [#allocation3], 256
    $region13: #{tpu_custom_call.1} parent=1 // pred_fallthru
      _
    // Predicated region
    $region14: #{tpu_custom_call.1} parent=1 // pred_check
      _
    $region15: #{tpu_custom_call.1} parent=1 // pred_check_branch
      %46 = sbr.rel (0) target = $region17
    $region16: #{tpu_custom_call.1} parent=1 // pred_region
      %47 = dma.done [#allocation6], 256
    $region17: #{tpu_custom_call.1} parent=1 // pred_fallthru
      _
    %s48 = sadd.s32 0, 0
    %s49 = smul.u32 2, %s48
    %s50 = sadd.s32 0, 0
    %s51 = smul.u32 2, %s50
    %p52 = scmp.eq.s32.totalorder 0, 0
    // Predicated region
    $region18: #{tpu_custom_call.1} parent=1 // pred_check
      %p53 = pneg %p52
    $region19: #{tpu_custom_call.1} parent=1 // pred_check_branch
      %55 = sbr.rel (%p53) target = $region21
    $region20: #{tpu_custom_call.1} parent=1 // pred_region
      %56 = vst [vmem:[#allocation7] sm:$0xff] 0.0
    $region21: #{tpu_custom_call.1} parent=1 // pred_fallthru
      _
    %v57 = vld [vmem:[#allocation2] sm:$0xff]
    %v58 = vld [vmem:[#allocation2 + $0x8] sm:$0xff]
    %v59 = vld [vmem:[#allocation5] sm:$0xff]
    %v60 = vld [vmem:[#allocation5 + $0x8] sm:$0xff]
    %v61 = vsub.f32 %v57, %v59
    %v62 = vsub.f32 %v58, %v60
    %v63 = vmul.f32 %v61, %v61
    %v64 = vmul.f32 %v62, %v62
    %v65 = vadd.f32 %v63, 1e-12
    %v66 = vadd.f32 %v64, 1e-12
    %v67 = vrsqrt.pop %v65
    %v68 = vmul.f32 %v65, %v67
    %vm69 = vcmp.eq.f32.partialorder %v65, inf
    %v70 = vsel %vm69, %v65, %v68
    %vm71 = vcmp.eq.f32.partialorder %v65, 0.0
    %v72 = vand.u32 %v65, 2147483648
    %v73 = vsel %vm71, %v72, %v70
    %v74 = vrsqrt.pop %v66
    %v75 = vmul.f32 %v66, %v74
    %vm76 = vcmp.eq.f32.partialorder %v66, inf
    %v77 = vsel %vm76, %v66, %v75
    %vm78 = vcmp.eq.f32.partialorder %v66, 0.0
    %v79 = vand.u32 %v66, 2147483648
    %v80 = vsel %vm78, %v79, %v77
    %v81 = vld [vmem:[#allocation7] sm:$0xff]
    %v82 = vadd.f32 %v73, %v80
    %v83 = vadd.f32 %v81, %v82
    %84 = vst [vmem:[#allocation7] sm:$0xff] %v83
    // Predicated region
    $region22: #{tpu_custom_call.1} parent=1 // pred_check
      _
    $region23: #{tpu_custom_call.1} parent=1 // pred_check_branch
      %86 = sbr.rel (0) target = $region25
    $region24: #{tpu_custom_call.1} parent=1 // pred_region
      %s88 = ssub.s32 128, 128
      %89 = vsyncadd [#allocation4], %s88
      %s91 = sshll.u32 [#allocation7], 4
      %s92 = int_to_ptr.vmem [resolvable:$true] %s91
      %94 = dma.vmem_to_hbm [thread:$0]  %s92, 128, %s2, [#allocation4]
    $region25: #{tpu_custom_call.1} parent=1 // pred_fallthru
      _
    // Predicated region
    $region26: #{tpu_custom_call.1} parent=1 // pred_check
      _
    $region27: #{tpu_custom_call.1} parent=1 // pred_check_branch
      %96 = sbr.rel (0) target = $region29
    $region28: #{tpu_custom_call.1} parent=1 // pred_region
      %97 = dma.done [#allocation4], 128
    $region29: #{tpu_custom_call.1} parent=1 // pred_fallthru
      _
    %98 = vsyncpa [#allocation3], 1
    %99 = vsyncpa [#allocation6], 1
    %100 = vsyncpa [#allocation4], 1

</llo_original>
